<compile_context>
chip_gen: v6e
topology: v6e:2x2x1
jax: 0.10.0
libtpu: 0.0.40
codegen_flags: <defaults>
</compile_context>

<pallas_src>
import jax
import jax.numpy as jnp
from jax.experimental import pallas as pl
from jax.experimental.pallas import tpu as pltpu


def _shifted_conv(x, w_ref, b_ref, kh, kw):
    """Valid cross-correlation (PyTorch semantics) of x:(nb, H, W) f32.

    w_ref: SMEM (kh*kw,) row-major flattened weights.
    b_ref: SMEM (1,) bias, folded into the first tap.

    The kw lane-shifted (last-dim) views are built once and reused across all
    kh row offsets; each row offset needs only one sublane-shifted slice of the
    per-row partial sum.  All kh*kw multiply-adds are plain VPU elementwise ops.
    """
    nb, h, w = x.shape
    ho, wo = h - kh + 1, w - kw + 1
    cols = [x[:, :, dj:dj + wo] for dj in range(kw)]   # kw lane shifts, reused
    acc = None
    for di in range(kh):
        row = cols[0] * w_ref[di * kw]
        if di == 0:
            row = row + b_ref[0]                       # bias folded into first tap
        for dj in range(1, kw):
            row = row + cols[dj] * w_ref[di * kw + dj]
        part = row[:, di:di + ho, :]                   # one sublane shift per di
        acc = part if acc is None else acc + part
    return acc


def _fused_conv5_conv3_kernel(x_ref, w5_ref, b5_ref, w3_ref, b3_ref, o_ref):
    """y = conv3x3(conv5x5(x)) for a block of nb batch elements.

    x_ref : VMEM (nb, H, W)
    w5_ref: SMEM (25,)   b5_ref: SMEM (1,)
    w3_ref: SMEM (9,)    b3_ref: SMEM (1,)
    o_ref : VMEM (nb, H-6, W-6)
    """
    x = x_ref[...].astype(jnp.float32)                 # (nb, H, W)
    y1 = _shifted_conv(x, w5_ref, b5_ref, 5, 5)        # (nb, H-4, W-4), never touches HBM
    y2 = _shifted_conv(y1, w3_ref, b3_ref, 3, 3)       # (nb, H-6, W-6)
    o_ref[...] = y2.astype(o_ref.dtype)


def _pick_batch_block(n):
    """Largest divisor of n that still leaves >= 2 grid steps (feeds both v7x TCs)."""
    if n <= 1:
        return max(n, 1)
    best = 1
    for d in range(1, n + 1):
        if n % d == 0 and n // d >= 2:
            best = d
    return best


def fused_conv5_conv3(x, w5, b5, w3, b3, *, nb=None):
    """x: (N, H, W) f32 -> (N, H-6, W-6) f32, computing conv3(conv5(x)) in one call."""
    n, h, w = x.shape
    ho, wo = h - 6, w - 6
    if nb is None:
        nb = _pick_batch_block(n)
    assert n % nb == 0, (n, nb)

    smem_spec = pl.BlockSpec(memory_space=pltpu.MemorySpace.SMEM)

    return pl.pallas_call(
        _fused_conv5_conv3_kernel,
        out_shape=jax.ShapeDtypeStruct((n, ho, wo), x.dtype),
        grid_spec=pltpu.PrefetchScalarGridSpec(
            num_scalar_prefetch=0,
            grid=(n // nb,),
            in_specs=[
                pl.BlockSpec((nb, h, w), lambda i: (i, 0, 0)),
                smem_spec,  # w5 flat (25,)
                smem_spec,  # b5 (1,)
                smem_spec,  # w3 flat (9,)
                smem_spec,  # b3 (1,)
            ],
            out_specs=pl.BlockSpec((nb, ho, wo), lambda i: (i, 0, 0)),
        ),
        compiler_params=pltpu.CompilerParams(
            dimension_semantics=("parallel",)),
    )(x, w5.reshape(-1), b5, w3.reshape(-1), b3)


def init_conv_params(key, ksize):
    """Init mirroring nn.Conv2d(1, 1, kernel_size=ksize): weight (k, k), bias (1,).

    PyTorch-style uniform(-bound, bound) with fan_in = 1*k*k.
    """
    kw_key, kb_key = jax.random.split(key)
    bound = 1.0 / jnp.sqrt(ksize * ksize)
    w = jax.random.uniform(kw_key, (ksize, ksize), jnp.float32, -bound, bound)
    b = jax.random.uniform(kb_key, (1,), jnp.float32, -bound, bound)
    return w, b


class SubModulePallas:
    """JAX/Pallas equivalent of SubModule."""

    def __init__(self, key):
        k5, k3 = jax.random.split(key)
        # self.conv = nn.Conv2d(1, 1, kernel_size=5)
        self.conv_w, self.conv_b = init_conv_params(k5, 5)
        # self.sub_green_conv = Green(nn.Conv2d(1, 1, kernel_size=3))
        # (Green is just a module-tag wrapper; no compute semantics.)
        self.green_w, self.green_b = init_conv_params(k3, 3)

    def forward(self, x_nchw):
        # layout: NCHW (C==1) -> NHW for the kernel, back to NCHW on output.
        assert x_nchw.shape[1] == 1
        x = x_nchw[:, 0, :, :]                                   # (N, H, W)
        y = fused_conv5_conv3(x, self.conv_w, self.conv_b,
                              self.green_w, self.green_b)        # (N, H-6, W-6)
        return y[:, None, :, :]                                  # (N, 1, H-6, W-6)


def _reference(x_nchw, mod):
    """Pure-JAX reference (lax.conv) for correctness check."""
    def conv(x, w, b):
        out = jax.lax.conv_general_dilated(
            x, w[None, None, :, :], window_strides=(1, 1), padding="VALID",
            dimension_numbers=("NCHW", "OIHW", "NCHW"))
        return out + b[0]
    y = conv(x_nchw, mod.conv_w, mod.conv_b)
    y = conv(y, mod.green_w, mod.green_b)
    return y


if __name__ == "__main__":
    key = jax.random.PRNGKey(0)
    pkey, xkey = jax.random.split(key)

    mod = SubModulePallas(pkey)

    # Small NCHW input consistent with Conv2d(1, 1, ...): batch=4, C=1, 16x16.
    # (batch=4 -> nb=2 per block, grid=(2,): exercises both batching and the
    #  >=2 parallel grid blocks needed to feed both v7x TensorCores.)
    x = jax.random.normal(xkey, (4, 1, 16, 16), jnp.float32)

    out = mod.forward(x)
    out = jax.block_until_ready(out)

    ref = _reference(x, mod)
    assert out.shape == (4, 1, 10, 10), out.shape
    assert jnp.allclose(out, ref, atol=1e-5, rtol=1e-5), "mismatch vs reference"

    print("KERNEL_OK")
</pallas_src>

<mosaic_0001>
module attributes {stable_mosaic.version = 11 : i64} {
  func.func @_fused_conv5_conv3_kernel(%arg0: i32, %arg1: memref<2x16x16xf32, #tpu.memory_space<vmem>>, %arg2: memref<25xf32, #tpu.memory_space<smem>>, %arg3: memref<1xf32, #tpu.memory_space<smem>>, %arg4: memref<9xf32, #tpu.memory_space<smem>>, %arg5: memref<1xf32, #tpu.memory_space<smem>>, %arg6: memref<2x10x10xf32, #tpu.memory_space<vmem>>) attributes {dimension_semantics = [#tpu.dimension_semantics<parallel>], iteration_bounds = array<i64: 2>, scalar_prefetch = 0 : i64, scratch_operands = 0 : i64, tpu.core_type = #tpu.core_type<tc>, window_params = [{transform_indices = @transform_0, window_bounds = array<i64: 2, 16, 16>}, {transform_indices = @transform_1, window_bounds = array<i64: 25>}, {transform_indices = @transform_2, window_bounds = array<i64: 1>}, {transform_indices = @transform_3, window_bounds = array<i64: 9>}, {transform_indices = @transform_4, window_bounds = array<i64: 1>}, {transform_indices = @transform_5, window_bounds = array<i64: 2, 10, 10>}]} {
    %c0 = arith.constant 0 : index
    %c0_0 = arith.constant 0 : index
    %c0_1 = arith.constant 0 : index
    %0 = vector.load %arg1[%c0, %c0_0, %c0_1] : memref<2x16x16xf32, #tpu.memory_space<vmem>>, vector<2x16x16xf32>
    %1 = vector.extract_strided_slice %0 {offsets = [0, 0, 0], sizes = [2, 16, 12], strides = [1, 1, 1]} : vector<2x16x16xf32> to vector<2x16x12xf32>
    %2 = vector.extract_strided_slice %0 {offsets = [0, 0, 1], sizes = [2, 16, 12], strides = [1, 1, 1]} : vector<2x16x16xf32> to vector<2x16x12xf32>
    %3 = vector.extract_strided_slice %0 {offsets = [0, 0, 2], sizes = [2, 16, 12], strides = [1, 1, 1]} : vector<2x16x16xf32> to vector<2x16x12xf32>
    %4 = vector.extract_strided_slice %0 {offsets = [0, 0, 3], sizes = [2, 16, 12], strides = [1, 1, 1]} : vector<2x16x16xf32> to vector<2x16x12xf32>
    %5 = vector.extract_strided_slice %0 {offsets = [0, 0, 4], sizes = [2, 16, 12], strides = [1, 1, 1]} : vector<2x16x16xf32> to vector<2x16x12xf32>
    %c0_2 = arith.constant 0 : index
    %6 = memref.load %arg2[%c0_2] : memref<25xf32, #tpu.memory_space<smem>>
    %7 = vector.broadcast %6 : f32 to vector<2x16x12xf32>
    %8 = arith.mulf %1, %7 : vector<2x16x12xf32>
    %c0_3 = arith.constant 0 : index
    %9 = memref.load %arg3[%c0_3] : memref<1xf32, #tpu.memory_space<smem>>
    %10 = vector.broadcast %9 : f32 to vector<2x16x12xf32>
    %11 = arith.addf %8, %10 : vector<2x16x12xf32>
    %c1 = arith.constant 1 : index
    %12 = memref.load %arg2[%c1] : memref<25xf32, #tpu.memory_space<smem>>
    %13 = vector.broadcast %12 : f32 to vector<2x16x12xf32>
    %14 = arith.mulf %2, %13 : vector<2x16x12xf32>
    %15 = arith.addf %11, %14 : vector<2x16x12xf32>
    %c2 = arith.constant 2 : index
    %16 = memref.load %arg2[%c2] : memref<25xf32, #tpu.memory_space<smem>>
    %17 = vector.broadcast %16 : f32 to vector<2x16x12xf32>
    %18 = arith.mulf %3, %17 : vector<2x16x12xf32>
    %19 = arith.addf %15, %18 : vector<2x16x12xf32>
    %c3 = arith.constant 3 : index
    %20 = memref.load %arg2[%c3] : memref<25xf32, #tpu.memory_space<smem>>
    %21 = vector.broadcast %20 : f32 to vector<2x16x12xf32>
    %22 = arith.mulf %4, %21 : vector<2x16x12xf32>
    %23 = arith.addf %19, %22 : vector<2x16x12xf32>
    %c4 = arith.constant 4 : index
    %24 = memref.load %arg2[%c4] : memref<25xf32, #tpu.memory_space<smem>>
    %25 = vector.broadcast %24 : f32 to vector<2x16x12xf32>
    %26 = arith.mulf %5, %25 : vector<2x16x12xf32>
    %27 = arith.addf %23, %26 : vector<2x16x12xf32>
    %28 = vector.extract_strided_slice %27 {offsets = [0, 0, 0], sizes = [2, 12, 12], strides = [1, 1, 1]} : vector<2x16x12xf32> to vector<2x12x12xf32>
    %c5 = arith.constant 5 : index
    %29 = memref.load %arg2[%c5] : memref<25xf32, #tpu.memory_space<smem>>
    %30 = vector.broadcast %29 : f32 to vector<2x16x12xf32>
    %31 = arith.mulf %1, %30 : vector<2x16x12xf32>
    %c6 = arith.constant 6 : index
    %32 = memref.load %arg2[%c6] : memref<25xf32, #tpu.memory_space<smem>>
    %33 = vector.broadcast %32 : f32 to vector<2x16x12xf32>
    %34 = arith.mulf %2, %33 : vector<2x16x12xf32>
    %35 = arith.addf %31, %34 : vector<2x16x12xf32>
    %c7 = arith.constant 7 : index
    %36 = memref.load %arg2[%c7] : memref<25xf32, #tpu.memory_space<smem>>
    %37 = vector.broadcast %36 : f32 to vector<2x16x12xf32>
    %38 = arith.mulf %3, %37 : vector<2x16x12xf32>
    %39 = arith.addf %35, %38 : vector<2x16x12xf32>
    %c8 = arith.constant 8 : index
    %40 = memref.load %arg2[%c8] : memref<25xf32, #tpu.memory_space<smem>>
    %41 = vector.broadcast %40 : f32 to vector<2x16x12xf32>
    %42 = arith.mulf %4, %41 : vector<2x16x12xf32>
    %43 = arith.addf %39, %42 : vector<2x16x12xf32>
    %c9 = arith.constant 9 : index
    %44 = memref.load %arg2[%c9] : memref<25xf32, #tpu.memory_space<smem>>
    %45 = vector.broadcast %44 : f32 to vector<2x16x12xf32>
    %46 = arith.mulf %5, %45 : vector<2x16x12xf32>
    %47 = arith.addf %43, %46 : vector<2x16x12xf32>
    %48 = vector.extract_strided_slice %47 {offsets = [0, 1, 0], sizes = [2, 12, 12], strides = [1, 1, 1]} : vector<2x16x12xf32> to vector<2x12x12xf32>
    %49 = arith.addf %28, %48 : vector<2x12x12xf32>
    %c10 = arith.constant 10 : index
    %50 = memref.load %arg2[%c10] : memref<25xf32, #tpu.memory_space<smem>>
    %51 = vector.broadcast %50 : f32 to vector<2x16x12xf32>
    %52 = arith.mulf %1, %51 : vector<2x16x12xf32>
    %c11 = arith.constant 11 : index
    %53 = memref.load %arg2[%c11] : memref<25xf32, #tpu.memory_space<smem>>
    %54 = vector.broadcast %53 : f32 to vector<2x16x12xf32>
    %55 = arith.mulf %2, %54 : vector<2x16x12xf32>
    %56 = arith.addf %52, %55 : vector<2x16x12xf32>
    %c12 = arith.constant 12 : index
    %57 = memref.load %arg2[%c12] : memref<25xf32, #tpu.memory_space<smem>>
    %58 = vector.broadcast %57 : f32 to vector<2x16x12xf32>
    %59 = arith.mulf %3, %58 : vector<2x16x12xf32>
    %60 = arith.addf %56, %59 : vector<2x16x12xf32>
    %c13 = arith.constant 13 : index
    %61 = memref.load %arg2[%c13] : memref<25xf32, #tpu.memory_space<smem>>
    %62 = vector.broadcast %61 : f32 to vector<2x16x12xf32>
    %63 = arith.mulf %4, %62 : vector<2x16x12xf32>
    %64 = arith.addf %60, %63 : vector<2x16x12xf32>
    %c14 = arith.constant 14 : index
    %65 = memref.load %arg2[%c14] : memref<25xf32, #tpu.memory_space<smem>>
    %66 = vector.broadcast %65 : f32 to vector<2x16x12xf32>
    %67 = arith.mulf %5, %66 : vector<2x16x12xf32>
    %68 = arith.addf %64, %67 : vector<2x16x12xf32>
    %69 = vector.extract_strided_slice %68 {offsets = [0, 2, 0], sizes = [2, 12, 12], strides = [1, 1, 1]} : vector<2x16x12xf32> to vector<2x12x12xf32>
    %70 = arith.addf %49, %69 : vector<2x12x12xf32>
    %c15 = arith.constant 15 : index
    %71 = memref.load %arg2[%c15] : memref<25xf32, #tpu.memory_space<smem>>
    %72 = vector.broadcast %71 : f32 to vector<2x16x12xf32>
    %73 = arith.mulf %1, %72 : vector<2x16x12xf32>
    %c16 = arith.constant 16 : index
    %74 = memref.load %arg2[%c16] : memref<25xf32, #tpu.memory_space<smem>>
    %75 = vector.broadcast %74 : f32 to vector<2x16x12xf32>
    %76 = arith.mulf %2, %75 : vector<2x16x12xf32>
    %77 = arith.addf %73, %76 : vector<2x16x12xf32>
    %c17 = arith.constant 17 : index
    %78 = memref.load %arg2[%c17] : memref<25xf32, #tpu.memory_space<smem>>
    %79 = vector.broadcast %78 : f32 to vector<2x16x12xf32>
    %80 = arith.mulf %3, %79 : vector<2x16x12xf32>
    %81 = arith.addf %77, %80 : vector<2x16x12xf32>
    %c18 = arith.constant 18 : index
    %82 = memref.load %arg2[%c18] : memref<25xf32, #tpu.memory_space<smem>>
    %83 = vector.broadcast %82 : f32 to vector<2x16x12xf32>
    %84 = arith.mulf %4, %83 : vector<2x16x12xf32>
    %85 = arith.addf %81, %84 : vector<2x16x12xf32>
    %c19 = arith.constant 19 : index
    %86 = memref.load %arg2[%c19] : memref<25xf32, #tpu.memory_space<smem>>
    %87 = vector.broadcast %86 : f32 to vector<2x16x12xf32>
    %88 = arith.mulf %5, %87 : vector<2x16x12xf32>
    %89 = arith.addf %85, %88 : vector<2x16x12xf32>
    %90 = vector.extract_strided_slice %89 {offsets = [0, 3, 0], sizes = [2, 12, 12], strides = [1, 1, 1]} : vector<2x16x12xf32> to vector<2x12x12xf32>
    %91 = arith.addf %70, %90 : vector<2x12x12xf32>
    %c20 = arith.constant 20 : index
    %92 = memref.load %arg2[%c20] : memref<25xf32, #tpu.memory_space<smem>>
    %93 = vector.broadcast %92 : f32 to vector<2x16x12xf32>
    %94 = arith.mulf %1, %93 : vector<2x16x12xf32>
    %c21 = arith.constant 21 : index
    %95 = memref.load %arg2[%c21] : memref<25xf32, #tpu.memory_space<smem>>
    %96 = vector.broadcast %95 : f32 to vector<2x16x12xf32>
    %97 = arith.mulf %2, %96 : vector<2x16x12xf32>
    %98 = arith.addf %94, %97 : vector<2x16x12xf32>
    %c22 = arith.constant 22 : index
    %99 = memref.load %arg2[%c22] : memref<25xf32, #tpu.memory_space<smem>>
    %100 = vector.broadcast %99 : f32 to vector<2x16x12xf32>
    %101 = arith.mulf %3, %100 : vector<2x16x12xf32>
    %102 = arith.addf %98, %101 : vector<2x16x12xf32>
    %c23 = arith.constant 23 : index
    %103 = memref.load %arg2[%c23] : memref<25xf32, #tpu.memory_space<smem>>
    %104 = vector.broadcast %103 : f32 to vector<2x16x12xf32>
    %105 = arith.mulf %4, %104 : vector<2x16x12xf32>
    %106 = arith.addf %102, %105 : vector<2x16x12xf32>
    %c24 = arith.constant 24 : index
    %107 = memref.load %arg2[%c24] : memref<25xf32, #tpu.memory_space<smem>>
    %108 = vector.broadcast %107 : f32 to vector<2x16x12xf32>
    %109 = arith.mulf %5, %108 : vector<2x16x12xf32>
    %110 = arith.addf %106, %109 : vector<2x16x12xf32>
    %111 = vector.extract_strided_slice %110 {offsets = [0, 4, 0], sizes = [2, 12, 12], strides = [1, 1, 1]} : vector<2x16x12xf32> to vector<2x12x12xf32>
    %112 = arith.addf %91, %111 : vector<2x12x12xf32>
    %113 = vector.extract_strided_slice %112 {offsets = [0, 0, 0], sizes = [2, 12, 10], strides = [1, 1, 1]} : vector<2x12x12xf32> to vector<2x12x10xf32>
    %114 = vector.extract_strided_slice %112 {offsets = [0, 0, 1], sizes = [2, 12, 10], strides = [1, 1, 1]} : vector<2x12x12xf32> to vector<2x12x10xf32>
    %115 = vector.extract_strided_slice %112 {offsets = [0, 0, 2], sizes = [2, 12, 10], strides = [1, 1, 1]} : vector<2x12x12xf32> to vector<2x12x10xf32>
    %c0_4 = arith.constant 0 : index
    %116 = memref.load %arg4[%c0_4] : memref<9xf32, #tpu.memory_space<smem>>
    %117 = vector.broadcast %116 : f32 to vector<2x12x10xf32>
    %118 = arith.mulf %113, %117 : vector<2x12x10xf32>
    %c0_5 = arith.constant 0 : index
    %119 = memref.load %arg5[%c0_5] : memref<1xf32, #tpu.memory_space<smem>>
    %120 = vector.broadcast %119 : f32 to vector<2x12x10xf32>
    %121 = arith.addf %118, %120 : vector<2x12x10xf32>
    %c1_6 = arith.constant 1 : index
    %122 = memref.load %arg4[%c1_6] : memref<9xf32, #tpu.memory_space<smem>>
    %123 = vector.broadcast %122 : f32 to vector<2x12x10xf32>
    %124 = arith.mulf %114, %123 : vector<2x12x10xf32>
    %125 = arith.addf %121, %124 : vector<2x12x10xf32>
    %c2_7 = arith.constant 2 : index
    %126 = memref.load %arg4[%c2_7] : memref<9xf32, #tpu.memory_space<smem>>
    %127 = vector.broadcast %126 : f32 to vector<2x12x10xf32>
    %128 = arith.mulf %115, %127 : vector<2x12x10xf32>
    %129 = arith.addf %125, %128 : vector<2x12x10xf32>
    %130 = vector.extract_strided_slice %129 {offsets = [0, 0, 0], sizes = [2, 10, 10], strides = [1, 1, 1]} : vector<2x12x10xf32> to vector<2x10x10xf32>
    %c3_8 = arith.constant 3 : index
    %131 = memref.load %arg4[%c3_8] : memref<9xf32, #tpu.memory_space<smem>>
    %132 = vector.broadcast %131 : f32 to vector<2x12x10xf32>
    %133 = arith.mulf %113, %132 : vector<2x12x10xf32>
    %c4_9 = arith.constant 4 : index
    %134 = memref.load %arg4[%c4_9] : memref<9xf32, #tpu.memory_space<smem>>
    %135 = vector.broadcast %134 : f32 to vector<2x12x10xf32>
    %136 = arith.mulf %114, %135 : vector<2x12x10xf32>
    %137 = arith.addf %133, %136 : vector<2x12x10xf32>
    %c5_10 = arith.constant 5 : index
    %138 = memref.load %arg4[%c5_10] : memref<9xf32, #tpu.memory_space<smem>>
    %139 = vector.broadcast %138 : f32 to vector<2x12x10xf32>
    %140 = arith.mulf %115, %139 : vector<2x12x10xf32>
    %141 = arith.addf %137, %140 : vector<2x12x10xf32>
    %142 = vector.extract_strided_slice %141 {offsets = [0, 1, 0], sizes = [2, 10, 10], strides = [1, 1, 1]} : vector<2x12x10xf32> to vector<2x10x10xf32>
    %143 = arith.addf %130, %142 : vector<2x10x10xf32>
    %c6_11 = arith.constant 6 : index
    %144 = memref.load %arg4[%c6_11] : memref<9xf32, #tpu.memory_space<smem>>
    %145 = vector.broadcast %144 : f32 to vector<2x12x10xf32>
    %146 = arith.mulf %113, %145 : vector<2x12x10xf32>
    %c7_12 = arith.constant 7 : index
    %147 = memref.load %arg4[%c7_12] : memref<9xf32, #tpu.memory_space<smem>>
    %148 = vector.broadcast %147 : f32 to vector<2x12x10xf32>
    %149 = arith.mulf %114, %148 : vector<2x12x10xf32>
    %150 = arith.addf %146, %149 : vector<2x12x10xf32>
    %c8_13 = arith.constant 8 : index
    %151 = memref.load %arg4[%c8_13] : memref<9xf32, #tpu.memory_space<smem>>
    %152 = vector.broadcast %151 : f32 to vector<2x12x10xf32>
    %153 = arith.mulf %115, %152 : vector<2x12x10xf32>
    %154 = arith.addf %150, %153 : vector<2x12x10xf32>
    %155 = vector.extract_strided_slice %154 {offsets = [0, 2, 0], sizes = [2, 10, 10], strides = [1, 1, 1]} : vector<2x12x10xf32> to vector<2x10x10xf32>
    %156 = arith.addf %143, %155 : vector<2x10x10xf32>
    %c0_14 = arith.constant 0 : index
    %c0_15 = arith.constant 0 : index
    %c0_16 = arith.constant 0 : index
    %157 = vector.load %arg6[%c0_14, %c0_15, %c0_16] : memref<2x10x10xf32, #tpu.memory_space<vmem>>, vector<2x10x10xf32>
    tpu.vector_store %arg6[%c0_14, %c0_15, %c0_16], %156 {strides = array<i32>} : memref<2x10x10xf32, #tpu.memory_space<vmem>>, vector<2x10x10xf32>,
    return
  }
  func.func @transform_0(%arg0: i32) -> (i32, i32, i32) {
    %c0_i32 = arith.constant 0 : i32
    %c0_i32_0 = arith.constant 0 : i32
    %c0_i32_1 = arith.constant 0 : i32
    return %arg0, %c0_i32, %c0_i32_0 : i32, i32, i32
  }
  func.func @transform_1(%arg0: i32) -> i32 {
    %c0_i32 = arith.constant 0 : i32
    %c0_i32_0 = arith.constant 0 : i32
    return %c0_i32 : i32
  }
  func.func @transform_2(%arg0: i32) -> i32 {
    %c0_i32 = arith.constant 0 : i32
    %c0_i32_0 = arith.constant 0 : i32
    return %c0_i32 : i32
  }
  func.func @transform_3(%arg0: i32) -> i32 {
    %c0_i32 = arith.constant 0 : i32
    %c0_i32_0 = arith.constant 0 : i32
    return %c0_i32 : i32
  }
  func.func @transform_4(%arg0: i32) -> i32 {
    %c0_i32 = arith.constant 0 : i32
    %c0_i32_0 = arith.constant 0 : i32
    return %c0_i32 : i32
  }
  func.func @transform_5(%arg0: i32) -> (i32, i32, i32) {
    %c0_i32 = arith.constant 0 : i32
    %c0_i32_0 = arith.constant 0 : i32
    %c0_i32_1 = arith.constant 0 : i32
    return %arg0, %c0_i32, %c0_i32_0 : i32, i32, i32
  }
}

</mosaic_0001>

<llo_original>
// kernel: tpu_custom_call.1
$region0: #{tpu_custom_call.1}
  #allocation0 [shape = 'u32[]', space=smem, size = 0x4, offset = 0x4, fixed_abs, tag = 'smem constant byte address 0x4 - core index']
  #allocation1 [shape = 'u32[144,128]{1,0:T(1,128)}', space=vmem, size = 0x12000, scoped, tag = 'internal scratch']
  #allocation2 [shape = 'f32[1]{0:T(128)S(6)}', space=smem, size = 0x200, scoped, tag = 'scoped memory for tpu_custom_call.1']
  #allocation3 [shape = 'f32[1]{0:T(128)S(6)}', space=smem, size = 0x200, scoped, tag = 'scoped memory for tpu_custom_call.1']
  %s0 = inlined_call_operand.hbm [shape: f32[4,16,16], index: 0, kind: input, shape index: {}]
  %s1 = inlined_call_operand.vmem [shape: f32[25], index: 1, kind: input, shape index: {}]
  %s2 = inlined_call_operand.<no memory space> [shape: f32[1], index: 2, kind: input, shape index: {}]
  %s3 = inlined_call_operand.vmem [shape: f32[9], index: 3, kind: input, shape index: {}]
  %s4 = inlined_call_operand.<no memory space> [shape: f32[1], index: 4, kind: input, shape index: {}]
  %s5 = inlined_call_operand.vmem [shape: f32[4,10,10], index: 5, kind: output, shape index: {}]
  %s6 = sld [smem:[#allocation0]]
  $region65: #{tpu_custom_call.1} parent=0
    _
  %s8 = ssub.s32 1, %s6
  %s9 = scalar_select 0, %s8, %s6
  %10 = sst [smem:[#allocation2]] %s2
  %11 = sst [smem:[#allocation3]] %s4
  $region1: #{tpu_custom_call.1} parent=0
    #allocation4 [shape = 'u8[32768]{0}', space=vmem, size = 0x8000, scoped, tag = 'input window, operand 0']
    #allocation5 [shape = 's32[2]{0}', space=sflag, size = 0x8, scoped, tag = 'scoped memory for tpu_custom_call.1']
    #allocation6 [shape = 's32[2]{0}', space=sflag, size = 0x8, scoped, tag = 'scoped memory for tpu_custom_call.1']
    #allocation7 [shape = 'u8[512]{0}', space=smem, size = 0x200, scoped, tag = 'input window, operand 1, single buffered']
    #allocation8 [shape = 'u8[512]{0}', space=smem, size = 0x200, scoped, tag = 'input window, operand 3, single buffered']
    #allocation9 [shape = 's32[1]{0}', space=sflag, size = 0x4, scoped, tag = 'scoped memory for tpu_custom_call.1']
    %12 = vsyncpa [#allocation5], 0
    %s13 = scalar_lea.sflag [#allocation5], 1
    %14 = vsyncpa %s13, 0
    %15 = vsyncpa [#allocation6], 0
    %16 = vsyncpa [#allocation9], 0
    loop: start=0, step=1, limit=4
    $region2: #{tpu_custom_call.1} parent=1 // loop_pre_header
      _
    $region3: #{tpu_custom_call.1} parent=1 // loop_header
      %s18 = sphi 0, %s22
      %p19 = scmp.ge.s32.totalorder %s18, 4
      %s28 = sphi 0, %s30
      %s31 = sphi 0, %s28
      %s32 = sphi 0, %s31
      %s48 = sphi 0, %s32
      %s52 = sphi 0, %s52
      %s54 = sphi 0, %s52
      %s55 = sphi 0, %s54
      %s69 = sphi 0, %s55
      %s73 = sphi 0, %s73
      %s75 = sphi 0, %s73
      %s76 = sphi 0, %s75
      %s90 = sphi 0, %s76
      %s94 = sphi 0, %s94
      %s96 = sphi 0, %s94
      %s97 = sphi 0, %s96
      %s111 = sphi 0, %s97
      %s115 = sphi 0, %s115
      %s117 = sphi 0, %s115
      %s118 = sphi 0, %s117
      %s132 = sphi 0, %s118
      %s138 = sphi 0, %s140
      %s141 = sphi 0, %s138
      %s142 = sphi 0, %s141
      %s158 = sphi 0, %s142
    $region4: #{tpu_custom_call.1} parent=1 // loop_header_branch
      %21 = sbr.rel (%p19) target = $region8
    $region5: #{tpu_custom_call.1} parent=1 // loop_body
      %s23 = ssub.s32 %s18, 1
      %s24 = ssub.s32 %s18, 2
      %s25 = sadd.s32 %s18, 1
      %s26 = ssub.s32 %s18, %s25
      %p27 = scmp.eq.s32.totalorder %s26, 0
      %s29 = sadd.s32 %s28, 1
      %s30 = scalar_select %p27, %s28, %s29
      %p33 = pneg %p27
      %p34 = scmp.eq.s32.totalorder %s18, 1
      %p35 = por %p33, %p34
      %p36 = scmp.ne.s32.totalorder %s28, %s31
      %p37 = scmp.eq.s32.totalorder %s18, 0
      %p38 = por %p36, %p37
      %p39 = scmp.ne.s32.totalorder %s28, %s31
      %p40 = scmp.eq.s32.totalorder %s23, 1
      %p41 = por %p39, %p40
      %p42 = scmp.ne.s32.totalorder %s31, %s32
      %p43 = scmp.eq.s32.totalorder %s23, 0
      %p44 = por %p42, %p43
      %p45 = scmp.ne.s32.totalorder %s31, %s32
      %p46 = scmp.eq.s32.totalorder %s24, 1
      %p47 = por %p45, %p46
      %p49 = scmp.ne.s32.totalorder %s32, %s48
      %p50 = scmp.eq.s32.totalorder %s24, 0
      %p51 = por %p49, %p50
      %s53 = sadd.s32 %s52, 1
      %p56 = scmp.eq.s32.totalorder %s18, 1
      %p57 = scmp.ne.s32.totalorder %s52, %s54
      %p58 = scmp.eq.s32.totalorder %s18, 0
      %p59 = por %p57, %p58
      %p60 = scmp.ne.s32.totalorder %s52, %s54
      %p61 = scmp.eq.s32.totalorder %s23, 1
      %p62 = por %p60, %p61
      %p63 = scmp.ne.s32.totalorder %s54, %s55
      %p64 = scmp.eq.s32.totalorder %s23, 0
      %p65 = por %p63, %p64
      %p66 = scmp.ne.s32.totalorder %s54, %s55
      %p67 = scmp.eq.s32.totalorder %s24, 1
      %p68 = por %p66, %p67
      %p70 = scmp.ne.s32.totalorder %s55, %s69
      %p71 = scmp.eq.s32.totalorder %s24, 0
      %p72 = por %p70, %p71
      %s74 = sadd.s32 %s73, 1
      %p77 = scmp.eq.s32.totalorder %s18, 1
      %p78 = scmp.ne.s32.totalorder %s73, %s75
      %p79 = scmp.eq.s32.totalorder %s18, 0
      %p80 = por %p78, %p79
      %p81 = scmp.ne.s32.totalorder %s73, %s75
      %p82 = scmp.eq.s32.totalorder %s23, 1
      %p83 = por %p81, %p82
      %p84 = scmp.ne.s32.totalorder %s75, %s76
      %p85 = scmp.eq.s32.totalorder %s23, 0
      %p86 = por %p84, %p85
      %p87 = scmp.ne.s32.totalorder %s75, %s76
      %p88 = scmp.eq.s32.totalorder %s24, 1
      %p89 = por %p87, %p88
      %p91 = scmp.ne.s32.totalorder %s76, %s90
      %p92 = scmp.eq.s32.totalorder %s24, 0
      %p93 = por %p91, %p92
      %s95 = sadd.s32 %s94, 1
      %p98 = scmp.eq.s32.totalorder %s18, 1
      %p99 = scmp.ne.s32.totalorder %s94, %s96
      %p100 = scmp.eq.s32.totalorder %s18, 0
      %p101 = por %p99, %p100
      %p102 = scmp.ne.s32.totalorder %s94, %s96
      %p103 = scmp.eq.s32.totalorder %s23, 1
      %p104 = por %p102, %p103
      %p105 = scmp.ne.s32.totalorder %s96, %s97
      %p106 = scmp.eq.s32.totalorder %s23, 0
      %p107 = por %p105, %p106
      %p108 = scmp.ne.s32.totalorder %s96, %s97
      %p109 = scmp.eq.s32.totalorder %s24, 1
      %p110 = por %p108, %p109
      %p112 = scmp.ne.s32.totalorder %s97, %s111
      %p113 = scmp.eq.s32.totalorder %s24, 0
      %p114 = por %p112, %p113
      %s116 = sadd.s32 %s115, 1
      %p119 = scmp.eq.s32.totalorder %s18, 1
      %p120 = scmp.ne.s32.totalorder %s115, %s117
      %p121 = scmp.eq.s32.totalorder %s18, 0
      %p122 = por %p120, %p121
      %p123 = scmp.ne.s32.totalorder %s115, %s117
      %p124 = scmp.eq.s32.totalorder %s23, 1
      %p125 = por %p123, %p124
      %p126 = scmp.ne.s32.totalorder %s117, %s118
      %p127 = scmp.eq.s32.totalorder %s23, 0
      %p128 = por %p126, %p127
      %p129 = scmp.ne.s32.totalorder %s117, %s118
      %p130 = scmp.eq.s32.totalorder %s24, 1
      %p131 = por %p129, %p130
      %p133 = scmp.ne.s32.totalorder %s118, %s132
      %p134 = scmp.eq.s32.totalorder %s24, 0
      %p135 = por %p133, %p134
      %s136 = ssub.s32 %s18, %s25
      %p137 = scmp.eq.s32.totalorder %s136, 0
      %s139 = sadd.s32 %s138, 1
      %s140 = scalar_select %p137, %s138, %s139
      %p143 = pneg %p137
      %p144 = scmp.eq.s32.totalorder %s18, 1
      %p145 = por %p143, %p144
      %p146 = scmp.ne.s32.totalorder %s138, %s141
      %p147 = scmp.eq.s32.totalorder %s18, 0
      %p148 = por %p146, %p147
      %p149 = scmp.ne.s32.totalorder %s138, %s141
      %p150 = scmp.eq.s32.totalorder %s23, 1
      %p151 = por %p149, %p150
      %p152 = scmp.ne.s32.totalorder %s141, %s142
      %p153 = scmp.eq.s32.totalorder %s23, 0
      %p154 = por %p152, %p153
      %p155 = scmp.ne.s32.totalorder %s141, %s142
      %p156 = scmp.eq.s32.totalorder %s24, 1
      %p157 = por %p155, %p156
      %p159 = scmp.ne.s32.totalorder %s142, %s158
      %p160 = scmp.eq.s32.totalorder %s24, 0
      %p161 = por %p159, %p160
      %p162 = scmp.le.s32.totalorder 1, %s18
      %p163 = scmp.lt.s32.totalorder %s18, 3
      %p164 = pnand %p162, %p163
      %p165 = pneg %p164
      // Predicated region
      $region9: #{tpu_custom_call.1} parent=5 // pred_check
        _
      $region10: #{tpu_custom_call.1} parent=5 // pred_check_branch
        %167 = sbr.rel (%p164) target = $region12
      $region11: #{tpu_custom_call.1} parent=5 // pred_region
        %s168 = ssub.s32 %s18, 1
        // Predicated region
        $region13: #{tpu_custom_call.1} parent=11 // pred_check
          %p169 = pneg %p65
        $region14: #{tpu_custom_call.1} parent=11 // pred_check_branch
          %171 = sbr.rel (%p169) target = $region16
        $region15: #{tpu_custom_call.1} parent=11 // pred_region
          %s173 = ssub.s32 16, 16
          %174 = vsyncadd [#allocation6], %s173
          %s176 = sshll.u32 %s1, 4
          %s177 = int_to_ptr.vmem [resolvable:$true] %s176
          %179 = dma.vmem_to_smem %s177, 16, [#allocation7], [#allocation6]
        $region16: #{tpu_custom_call.1} parent=11 // pred_fallthru
          _
        // Predicated region
        $region17: #{tpu_custom_call.1} parent=11 // pred_check
          %p180 = pneg %p86
        $region18: #{tpu_custom_call.1} parent=11 // pred_check_branch
          %182 = sbr.rel (%p180) target = $region20
        $region19: #{tpu_custom_call.1} parent=11 // pred_region
          _
        $region20: #{tpu_custom_call.1} parent=11 // pred_fallthru
          _
        // Predicated region
        $region21: #{tpu_custom_call.1} parent=11 // pred_check
          %p183 = pneg %p107
        $region22: #{tpu_custom_call.1} parent=11 // pred_check_branch
          %185 = sbr.rel (%p183) target = $region24
        $region23: #{tpu_custom_call.1} parent=11 // pred_region
          %s187 = ssub.s32 16, 16
          %188 = vsyncadd [#allocation9], %s187
          %s190 = sshll.u32 %s3, 4
          %s191 = int_to_ptr.vmem [resolvable:$true] %s190
          %193 = dma.vmem_to_smem %s191, 16, [#allocation8], [#allocation9]
        $region24: #{tpu_custom_call.1} parent=11 // pred_fallthru
          _
        // Predicated region
        $region25: #{tpu_custom_call.1} parent=11 // pred_check
          %p194 = pneg %p128
        $region26: #{tpu_custom_call.1} parent=11 // pred_check_branch
          %196 = sbr.rel (%p194) target = $region28
        $region27: #{tpu_custom_call.1} parent=11 // pred_region
          _
        $region28: #{tpu_custom_call.1} parent=11 // pred_fallthru
          _
      $region12: #{tpu_custom_call.1} parent=5 // pred_fallthru
        _
      %p197 = scmp.lt.s32.totalorder %s18, 2
      // Predicated region
      $region29: #{tpu_custom_call.1} parent=5 // pred_check
        %p198 = pneg %p197
      $region30: #{tpu_custom_call.1} parent=5 // pred_check_branch
        %200 = sbr.rel (%p198) target = $region32
      $region31: #{tpu_custom_call.1} parent=5 // pred_region
        // Predicated region
        $region33: #{tpu_custom_call.1} parent=31 // pred_check
          %p201 = pneg %p38
        $region34: #{tpu_custom_call.1} parent=31 // pred_check_branch
          %203 = sbr.rel (%p201) target = $region36
        $region35: #{tpu_custom_call.1} parent=31 // pred_region
          %s204 = sand.u32 %s28, 1
          %s205 = scalar_lea.sflag [#allocation5], %s204
          %s206 = sand.u32 %s28, 1
          %s207 = smul.addr %s206, 32
          %s208 = scalar_lea.vmem [#allocation4], %s207
          %s209 = smul.u32 2, %s18
          %s211 = ssub.s32 512, 512
          %212 = vsyncadd %s205, %s211
          %s213 = smul.addr %s209, 2
          %s214 = smul.addr %s213, 128
          %s215 = scalar_lea.hbm %s0, %s214
          %s216 = sshll.u32 %s208, 4
          %s217 = int_to_ptr.vmem [resolvable:$true] %s216
          %222 = dma.hbm_to_vmem [thread:$0]  %s215, 512, %s217, %s205, 128, 128, 8
        $region36: #{tpu_custom_call.1} parent=31 // pred_fallthru
          _
      $region32: #{tpu_custom_call.1} parent=5 // pred_fallthru
        _
      %p223 = scmp.le.s32.totalorder 1, %s18
      %p224 = scmp.lt.s32.totalorder %s18, 3
      %p225 = pnand %p223, %p224
      %p226 = pneg %p225
      // Predicated region
      $region37: #{tpu_custom_call.1} parent=5 // pred_check
        _
      $region38: #{tpu_custom_call.1} parent=5 // pred_check_branch
        %228 = sbr.rel (%p225) target = $region40
      $region39: #{tpu_custom_call.1} parent=5 // pred_region
        %s229 = ssub.s32 %s18, 1
        %s230 = sand.u32 %s31, 1
        %s231 = scalar_lea.sflag [#allocation5], %s230
        %s232 = sand.u32 %s31, 1
        %s233 = smul.addr %s232, 32
        %s234 = scalar_lea.vmem [#allocation4], %s233
        // Predicated region
        $region41: #{tpu_custom_call.1} parent=39 // pred_check
          %p235 = pneg %p44
        $region42: #{tpu_custom_call.1} parent=39 // pred_check_branch
          %237 = sbr.rel (%p235) target = $region44
        $region43: #{tpu_custom_call.1} parent=39 // pred_region
          %238 = dma.done %s231, 512
        $region44: #{tpu_custom_call.1} parent=39 // pred_fallthru
          _
        // Predicated region
        $region45: #{tpu_custom_call.1} parent=39 // pred_check
          %p239 = pneg %p65
        $region46: #{tpu_custom_call.1} parent=39 // pred_check_branch
          %241 = sbr.rel (%p239) target = $region48
        $region47: #{tpu_custom_call.1} parent=39 // pred_region
          %242 = dma.done [#allocation6], 16
        $region48: #{tpu_custom_call.1} parent=39 // pred_fallthru
          _
        // Predicated region
        $region49: #{tpu_custom_call.1} parent=39 // pred_check
          %p243 = pneg %p107
        $region50: #{tpu_custom_call.1} parent=39 // pred_check_branch
          %245 = sbr.rel (%p243) target = $region52
        $region51: #{tpu_custom_call.1} parent=39 // pred_region
          %246 = dma.done [#allocation9], 16
        $region52: #{tpu_custom_call.1} parent=39 // pred_fallthru
          _
        %247 = sfence
        %s248 = sand.u32 %s31, 1
        %s249 = scalar_lea.sflag [#allocation5], %s248
        %s250 = sand.u32 %s31, 1
        %s251 = smul.addr %s250, 32
        %s252 = scalar_lea.vmem [#allocation4], %s251
        %p253 = pneg %p44
        %p254 = pneg %p41
        %p255 = pneg %p65
        %p256 = pneg %p62
        %p257 = pneg %p86
        %p258 = pneg %p83
        %p259 = pneg %p107
        %p260 = pneg %p104
        %p261 = pneg %p128
        %p262 = pneg %p125
        %p263 = pneg %p154
        %p264 = pneg %p151
        %s265 = smul.u32 2, %s23
        %p266 = scmp.lt.s32.totalorder %s265, 3
        %s267 = scalar_select %p266, %s265, 3
        %s268 = smul.addr %s267, 2
        %s269 = smul.addr %s268, 8
        %s270 = scalar_lea.vmem %s5, %s269
        %s271 = smul.u32 2, %s23
        %s272 = smul.u32 2, %s23
        %p273 = scmp.lt.s32.totalorder %s272, 3
        %s274 = scalar_select %p273, %s272, 3
        %s275 = smul.addr %s274, 2
        %s276 = smul.addr %s275, 8
        %s277 = scalar_lea.vmem %s5, %s276
        %s278 = smul.u32 2, %s23
        %v279 = vld [vmem:[%s234] sm:$0xff]
        %v280 = vld [vmem:[%s234 + $0x8] sm:$0xff]
        %v281 = vld [vmem:[%s234 + $0x10] sm:$0xff]
        %v282 = vld [vmem:[%s234 + $0x18] sm:$0xff]
        %s283 = sld [smem:[#allocation7]]
        %v284 = vstv %s283
        %v285 = vmul.f32 %v279, %v284
        %v286 = vmul.f32 %v280, %v284
        %v287 = vmul.f32 %v281, %v284
        %v288 = vmul.f32 %v282, %v284
        %s289 = sld [smem:[#allocation2]]
        %v290 = vstv %s289
        %v291 = vadd.f32 %v285, %v290
        %v292 = vadd.f32 %v286, %v290
        %v293 = vadd.f32 %v287, %v290
        %v294 = vadd.f32 %v288, %v290
        %s295 = sld [smem:[#allocation7 + $0x1]]
        %v296 = vstv %s295
        %v297 = vmul.f32 %v279, %v296
        %v298 = vmul.f32 %v280, %v296
        %v299 = vmul.f32 %v281, %v296
        %v300 = vmul.f32 %v282, %v296
        %305 = vrot.lane.b32.xlu0 %v297, 127
        %v306 = vpop.permute.xlu0 %305
        %307 = vrot.lane.b32.xlu0 %v298, 127
        %v308 = vpop.permute.xlu0 %307
        %309 = vrot.lane.b32.xlu0 %v299, 127
        %v310 = vpop.permute.xlu0 %309
        %311 = vrot.lane.b32.xlu0 %v300, 127
        %v312 = vpop.permute.xlu0 %311
        %v317 = vadd.f32 %v291, %v306
        %v318 = vadd.f32 %v292, %v308
        %v319 = vadd.f32 %v293, %v310
        %v320 = vadd.f32 %v294, %v312
        %s321 = sld [smem:[#allocation7 + $0x2]]
        %v322 = vstv %s321
        %v323 = vmul.f32 %v279, %v322
        %v324 = vmul.f32 %v280, %v322
        %v325 = vmul.f32 %v281, %v322
        %v326 = vmul.f32 %v282, %v322
        %331 = vrot.lane.b32.xlu0 %v323, 126
        %v332 = vpop.permute.xlu0 %331
        %333 = vrot.lane.b32.xlu0 %v324, 126
        %v334 = vpop.permute.xlu0 %333
        %335 = vrot.lane.b32.xlu0 %v325, 126
        %v336 = vpop.permute.xlu0 %335
        %337 = vrot.lane.b32.xlu0 %v326, 126
        %v338 = vpop.permute.xlu0 %337
        %v343 = vadd.f32 %v317, %v332
        %v344 = vadd.f32 %v318, %v334
        %v345 = vadd.f32 %v319, %v336
        %v346 = vadd.f32 %v320, %v338
        %s347 = sld [smem:[#allocation7 + $0x3]]
        %v348 = vstv %s347
        %v349 = vmul.f32 %v279, %v348
        %v350 = vmul.f32 %v280, %v348
        %v351 = vmul.f32 %v281, %v348
        %v352 = vmul.f32 %v282, %v348
        %357 = vrot.lane.b32.xlu0 %v349, 125
        %v358 = vpop.permute.xlu0 %357
        %359 = vrot.lane.b32.xlu0 %v350, 125
        %v360 = vpop.permute.xlu0 %359
        %361 = vrot.lane.b32.xlu0 %v351, 125
        %v362 = vpop.permute.xlu0 %361
        %363 = vrot.lane.b32.xlu0 %v352, 125
        %v364 = vpop.permute.xlu0 %363
        %v369 = vadd.f32 %v343, %v358
        %v370 = vadd.f32 %v344, %v360
        %v371 = vadd.f32 %v345, %v362
        %v372 = vadd.f32 %v346, %v364
        %s373 = sld [smem:[#allocation7 + $0x4]]
        %v374 = vstv %s373
        %v375 = vmul.f32 %v279, %v374
        %v376 = vmul.f32 %v280, %v374
        %v377 = vmul.f32 %v281, %v374
        %v378 = vmul.f32 %v282, %v374
        %383 = vrot.lane.b32.xlu0 %v375, 124
        %v384 = vpop.permute.xlu0 %383
        %385 = vrot.lane.b32.xlu0 %v376, 124
        %v386 = vpop.permute.xlu0 %385
        %387 = vrot.lane.b32.xlu0 %v377, 124
        %v388 = vpop.permute.xlu0 %387
        %389 = vrot.lane.b32.xlu0 %v378, 124
        %v390 = vpop.permute.xlu0 %389
        %v395 = vadd.f32 %v369, %v384
        %v396 = vadd.f32 %v370, %v386
        %v397 = vadd.f32 %v371, %v388
        %v398 = vadd.f32 %v372, %v390
        %s399 = sld [smem:[#allocation7 + $0x5]]
        %v400 = vstv %s399
        %v401 = vmul.f32 %v279, %v400
        %v402 = vmul.f32 %v280, %v400
        %v403 = vmul.f32 %v281, %v400
        %v404 = vmul.f32 %v282, %v400
        %s405 = sld [smem:[#allocation7 + $0x6]]
        %v406 = vstv %s405
        %v407 = vmul.f32 %v279, %v406
        %v408 = vmul.f32 %v280, %v406
        %v409 = vmul.f32 %v281, %v406
        %v410 = vmul.f32 %v282, %v406
        %415 = vrot.lane.b32.xlu0 %v407, 127
        %v416 = vpop.permute.xlu0 %415
        %417 = vrot.lane.b32.xlu0 %v408, 127
        %v418 = vpop.permute.xlu0 %417
        %419 = vrot.lane.b32.xlu0 %v409, 127
        %v420 = vpop.permute.xlu0 %419
        %421 = vrot.lane.b32.xlu0 %v410, 127
        %v422 = vpop.permute.xlu0 %421
        %v427 = vadd.f32 %v401, %v416
        %v428 = vadd.f32 %v402, %v418
        %v429 = vadd.f32 %v403, %v420
        %v430 = vadd.f32 %v404, %v422
        %s431 = sld [smem:[#allocation7 + $0x7]]
        %v432 = vstv %s431
        %v433 = vmul.f32 %v279, %v432
        %v434 = vmul.f32 %v280, %v432
        %v435 = vmul.f32 %v281, %v432
        %v436 = vmul.f32 %v282, %v432
        %441 = vrot.lane.b32.xlu0 %v433, 126
        %v442 = vpop.permute.xlu0 %441
        %443 = vrot.lane.b32.xlu0 %v434, 126
        %v444 = vpop.permute.xlu0 %443
        %445 = vrot.lane.b32.xlu0 %v435, 126
        %v446 = vpop.permute.xlu0 %445
        %447 = vrot.lane.b32.xlu0 %v436, 126
        %v448 = vpop.permute.xlu0 %447
        %v453 = vadd.f32 %v427, %v442
        %v454 = vadd.f32 %v428, %v444
        %v455 = vadd.f32 %v429, %v446
        %v456 = vadd.f32 %v430, %v448
        %s457 = sld [smem:[#allocation7 + $0x8]]
        %v458 = vstv %s457
        %v459 = vmul.f32 %v279, %v458
        %v460 = vmul.f32 %v280, %v458
        %v461 = vmul.f32 %v281, %v458
        %v462 = vmul.f32 %v282, %v458
        %467 = vrot.lane.b32.xlu0 %v459, 125
        %v468 = vpop.permute.xlu0 %467
        %469 = vrot.lane.b32.xlu0 %v460, 125
        %v470 = vpop.permute.xlu0 %469
        %471 = vrot.lane.b32.xlu0 %v461, 125
        %v472 = vpop.permute.xlu0 %471
        %473 = vrot.lane.b32.xlu0 %v462, 125
        %v474 = vpop.permute.xlu0 %473
        %v479 = vadd.f32 %v453, %v468
        %v480 = vadd.f32 %v454, %v470
        %v481 = vadd.f32 %v455, %v472
        %v482 = vadd.f32 %v456, %v474
        %s483 = sld [smem:[#allocation7 + $0x9]]
        %v484 = vstv %s483
        %v485 = vmul.f32 %v279, %v484
        %v486 = vmul.f32 %v280, %v484
        %v487 = vmul.f32 %v281, %v484
        %v488 = vmul.f32 %v282, %v484
        %493 = vrot.lane.b32.xlu0 %v485, 124
        %v494 = vpop.permute.xlu0 %493
        %495 = vrot.lane.b32.xlu0 %v486, 124
        %v496 = vpop.permute.xlu0 %495
        %497 = vrot.lane.b32.xlu0 %v487, 124
        %v498 = vpop.permute.xlu0 %497
        %499 = vrot.lane.b32.xlu0 %v488, 124
        %v500 = vpop.permute.xlu0 %499
        %v505 = vadd.f32 %v479, %v494
        %v506 = vadd.f32 %v480, %v496
        %v507 = vadd.f32 %v481, %v498
        %v508 = vadd.f32 %v482, %v500
        %vm513 = vcmask 1046528
        %v514 = vrot.slane %v505, 1
        %v515 = vrot.slane %v506, 1
        %v516 = vsel %vm513, %v514, %v515
        %v517 = vrot.slane %v507, 1
        %v518 = vrot.slane %v508, 1
        %v519 = vsel %vm513, %v517, %v518
        %v524 = vadd.f32 %v395, %v516
        %v525 = vadd.f32 %v396, %v515
        %v526 = vadd.f32 %v397, %v519
        %v527 = vadd.f32 %v398, %v518
        %s528 = sld [smem:[#allocation7 + $0xa]]
        %v529 = vstv %s528
        %v530 = vmul.f32 %v279, %v529
        %v531 = vmul.f32 %v280, %v529
        %v532 = vmul.f32 %v281, %v529
        %v533 = vmul.f32 %v282, %v529
        %s534 = sld [smem:[#allocation7 + $0xb]]
        %v535 = vstv %s534
        %v536 = vmul.f32 %v279, %v535
        %v537 = vmul.f32 %v280, %v535
        %v538 = vmul.f32 %v281, %v535
        %v539 = vmul.f32 %v282, %v535
        %544 = vrot.lane.b32.xlu0 %v536, 127
        %v545 = vpop.permute.xlu0 %544
        %546 = vrot.lane.b32.xlu0 %v537, 127
        %v547 = vpop.permute.xlu0 %546
        %548 = vrot.lane.b32.xlu0 %v538, 127
        %v549 = vpop.permute.xlu0 %548
        %550 = vrot.lane.b32.xlu0 %v539, 127
        %v551 = vpop.permute.xlu0 %550
        %v556 = vadd.f32 %v530, %v545
        %v557 = vadd.f32 %v531, %v547
        %v558 = vadd.f32 %v532, %v549
        %v559 = vadd.f32 %v533, %v551
        %s560 = sld [smem:[#allocation7 + $0xc]]
        %v561 = vstv %s560
        %v562 = vmul.f32 %v279, %v561
        %v563 = vmul.f32 %v280, %v561
        %v564 = vmul.f32 %v281, %v561
        %v565 = vmul.f32 %v282, %v561
        %570 = vrot.lane.b32.xlu0 %v562, 126
        %v571 = vpop.permute.xlu0 %570
        %572 = vrot.lane.b32.xlu0 %v563, 126
        %v573 = vpop.permute.xlu0 %572
        %574 = vrot.lane.b32.xlu0 %v564, 126
        %v575 = vpop.permute.xlu0 %574
        %576 = vrot.lane.b32.xlu0 %v565, 126
        %v577 = vpop.permute.xlu0 %576
        %v582 = vadd.f32 %v556, %v571
        %v583 = vadd.f32 %v557, %v573
        %v584 = vadd.f32 %v558, %v575
        %v585 = vadd.f32 %v559, %v577
        %s586 = sld [smem:[#allocation7 + $0xd]]
        %v587 = vstv %s586
        %v588 = vmul.f32 %v279, %v587
        %v589 = vmul.f32 %v280, %v587
        %v590 = vmul.f32 %v281, %v587
        %v591 = vmul.f32 %v282, %v587
        %596 = vrot.lane.b32.xlu0 %v588, 125
        %v597 = vpop.permute.xlu0 %596
        %598 = vrot.lane.b32.xlu0 %v589, 125
        %v599 = vpop.permute.xlu0 %598
        %600 = vrot.lane.b32.xlu0 %v590, 125
        %v601 = vpop.permute.xlu0 %600
        %602 = vrot.lane.b32.xlu0 %v591, 125
        %v603 = vpop.permute.xlu0 %602
        %v608 = vadd.f32 %v582, %v597
        %v609 = vadd.f32 %v583, %v599
        %v610 = vadd.f32 %v584, %v601
        %v611 = vadd.f32 %v585, %v603
        %s612 = sld [smem:[#allocation7 + $0xe]]
        %v613 = vstv %s612
        %v614 = vmul.f32 %v279, %v613
        %v615 = vmul.f32 %v280, %v613
        %v616 = vmul.f32 %v281, %v613
        %v617 = vmul.f32 %v282, %v613
        %622 = vrot.lane.b32.xlu0 %v614, 124
        %v623 = vpop.permute.xlu0 %622
        %624 = vrot.lane.b32.xlu0 %v615, 124
        %v625 = vpop.permute.xlu0 %624
        %626 = vrot.lane.b32.xlu0 %v616, 124
        %v627 = vpop.permute.xlu0 %626
        %628 = vrot.lane.b32.xlu0 %v617, 124
        %v629 = vpop.permute.xlu0 %628
        %v634 = vadd.f32 %v608, %v623
        %v635 = vadd.f32 %v609, %v625
        %v636 = vadd.f32 %v610, %v627
        %v637 = vadd.f32 %v611, %v629
        %vm642 = vcmask 1045504
        %v643 = vrot.slane %v634, 2
        %v644 = vrot.slane %v635, 2
        %v645 = vsel %vm642, %v643, %v644
        %v646 = vrot.slane %v636, 2
        %v647 = vrot.slane %v637, 2
        %v648 = vsel %vm642, %v646, %v647
        %v653 = vadd.f32 %v524, %v645
        %v654 = vadd.f32 %v525, %v644
        %v655 = vadd.f32 %v526, %v648
        %v656 = vadd.f32 %v527, %v647
        %s657 = sld [smem:[#allocation7 + $0xf]]
        %v658 = vstv %s657
        %v659 = vmul.f32 %v279, %v658
        %v660 = vmul.f32 %v280, %v658
        %v661 = vmul.f32 %v281, %v658
        %v662 = vmul.f32 %v282, %v658
        %s663 = sld [smem:[#allocation7 + $0x10]]
        %v664 = vstv %s663
        %v665 = vmul.f32 %v279, %v664
        %v666 = vmul.f32 %v280, %v664
        %v667 = vmul.f32 %v281, %v664
        %v668 = vmul.f32 %v282, %v664
        %673 = vrot.lane.b32.xlu0 %v665, 127
        %v674 = vpop.permute.xlu0 %673
        %675 = vrot.lane.b32.xlu0 %v666, 127
        %v676 = vpop.permute.xlu0 %675
        %677 = vrot.lane.b32.xlu0 %v667, 127
        %v678 = vpop.permute.xlu0 %677
        %679 = vrot.lane.b32.xlu0 %v668, 127
        %v680 = vpop.permute.xlu0 %679
        %v685 = vadd.f32 %v659, %v674
        %v686 = vadd.f32 %v660, %v676
        %v687 = vadd.f32 %v661, %v678
        %v688 = vadd.f32 %v662, %v680
        %s689 = sld [smem:[#allocation7 + $0x11]]
        %v690 = vstv %s689
        %v691 = vmul.f32 %v279, %v690
        %v692 = vmul.f32 %v280, %v690
        %v693 = vmul.f32 %v281, %v690
        %v694 = vmul.f32 %v282, %v690
        %699 = vrot.lane.b32.xlu0 %v691, 126
        %v700 = vpop.permute.xlu0 %699
        %701 = vrot.lane.b32.xlu0 %v692, 126
        %v702 = vpop.permute.xlu0 %701
        %703 = vrot.lane.b32.xlu0 %v693, 126
        %v704 = vpop.permute.xlu0 %703
        %705 = vrot.lane.b32.xlu0 %v694, 126
        %v706 = vpop.permute.xlu0 %705
        %v711 = vadd.f32 %v685, %v700
        %v712 = vadd.f32 %v686, %v702
        %v713 = vadd.f32 %v687, %v704
        %v714 = vadd.f32 %v688, %v706
        %s715 = sld [smem:[#allocation7 + $0x12]]
        %v716 = vstv %s715
        %v717 = vmul.f32 %v279, %v716
        %v718 = vmul.f32 %v280, %v716
        %v719 = vmul.f32 %v281, %v716
        %v720 = vmul.f32 %v282, %v716
        %725 = vrot.lane.b32.xlu0 %v717, 125
        %v726 = vpop.permute.xlu0 %725
        %727 = vrot.lane.b32.xlu0 %v718, 125
        %v728 = vpop.permute.xlu0 %727
        %729 = vrot.lane.b32.xlu0 %v719, 125
        %v730 = vpop.permute.xlu0 %729
        %731 = vrot.lane.b32.xlu0 %v720, 125
        %v732 = vpop.permute.xlu0 %731
        %v737 = vadd.f32 %v711, %v726
        %v738 = vadd.f32 %v712, %v728
        %v739 = vadd.f32 %v713, %v730
        %v740 = vadd.f32 %v714, %v732
        %s741 = sld [smem:[#allocation7 + $0x13]]
        %v742 = vstv %s741
        %v743 = vmul.f32 %v279, %v742
        %v744 = vmul.f32 %v280, %v742
        %v745 = vmul.f32 %v281, %v742
        %v746 = vmul.f32 %v282, %v742
        %751 = vrot.lane.b32.xlu0 %v743, 124
        %v752 = vpop.permute.xlu0 %751
        %753 = vrot.lane.b32.xlu0 %v744, 124
        %v754 = vpop.permute.xlu0 %753
        %755 = vrot.lane.b32.xlu0 %v745, 124
        %v756 = vpop.permute.xlu0 %755
        %757 = vrot.lane.b32.xlu0 %v746, 124
        %v758 = vpop.permute.xlu0 %757
        %v763 = vadd.f32 %v737, %v752
        %v764 = vadd.f32 %v738, %v754
        %v765 = vadd.f32 %v739, %v756
        %v766 = vadd.f32 %v740, %v758
        %vm771 = vcmask 1044480
        %v772 = vrot.slane %v763, 3
        %v773 = vrot.slane %v764, 3
        %v774 = vsel %vm771, %v772, %v773
        %v775 = vrot.slane %v765, 3
        %v776 = vrot.slane %v766, 3
        %v777 = vsel %vm771, %v775, %v776
        %v782 = vadd.f32 %v653, %v774
        %v783 = vadd.f32 %v654, %v773
        %v784 = vadd.f32 %v655, %v777
        %v785 = vadd.f32 %v656, %v776
        %s786 = sld [smem:[#allocation7 + $0x14]]
        %v787 = vstv %s786
        %v788 = vmul.f32 %v279, %v787
        %v789 = vmul.f32 %v280, %v787
        %v790 = vmul.f32 %v281, %v787
        %v791 = vmul.f32 %v282, %v787
        %s792 = sld [smem:[#allocation7 + $0x15]]
        %v793 = vstv %s792
        %v794 = vmul.f32 %v279, %v793
        %v795 = vmul.f32 %v280, %v793
        %v796 = vmul.f32 %v281, %v793
        %v797 = vmul.f32 %v282, %v793
        %802 = vrot.lane.b32.xlu0 %v794, 127
        %v803 = vpop.permute.xlu0 %802
        %804 = vrot.lane.b32.xlu0 %v795, 127
        %v805 = vpop.permute.xlu0 %804
        %806 = vrot.lane.b32.xlu0 %v796, 127
        %v807 = vpop.permute.xlu0 %806
        %808 = vrot.lane.b32.xlu0 %v797, 127
        %v809 = vpop.permute.xlu0 %808
        %v814 = vadd.f32 %v788, %v803
        %v815 = vadd.f32 %v789, %v805
        %v816 = vadd.f32 %v790, %v807
        %v817 = vadd.f32 %v791, %v809
        %s818 = sld [smem:[#allocation7 + $0x16]]
        %v819 = vstv %s818
        %v820 = vmul.f32 %v279, %v819
        %v821 = vmul.f32 %v280, %v819
        %v822 = vmul.f32 %v281, %v819
        %v823 = vmul.f32 %v282, %v819
        %828 = vrot.lane.b32.xlu0 %v820, 126
        %v829 = vpop.permute.xlu0 %828
        %830 = vrot.lane.b32.xlu0 %v821, 126
        %v831 = vpop.permute.xlu0 %830
        %832 = vrot.lane.b32.xlu0 %v822, 126
        %v833 = vpop.permute.xlu0 %832
        %834 = vrot.lane.b32.xlu0 %v823, 126
        %v835 = vpop.permute.xlu0 %834
        %v840 = vadd.f32 %v814, %v829
        %v841 = vadd.f32 %v815, %v831
        %v842 = vadd.f32 %v816, %v833
        %v843 = vadd.f32 %v817, %v835
        %s844 = sld [smem:[#allocation7 + $0x17]]
        %v845 = vstv %s844
        %v846 = vmul.f32 %v279, %v845
        %v847 = vmul.f32 %v280, %v845
        %v848 = vmul.f32 %v281, %v845
        %v849 = vmul.f32 %v282, %v845
        %854 = vrot.lane.b32.xlu0 %v846, 125
        %v855 = vpop.permute.xlu0 %854
        %856 = vrot.lane.b32.xlu0 %v847, 125
        %v857 = vpop.permute.xlu0 %856
        %858 = vrot.lane.b32.xlu0 %v848, 125
        %v859 = vpop.permute.xlu0 %858
        %860 = vrot.lane.b32.xlu0 %v849, 125
        %v861 = vpop.permute.xlu0 %860
        %v866 = vadd.f32 %v840, %v855
        %v867 = vadd.f32 %v841, %v857
        %v868 = vadd.f32 %v842, %v859
        %v869 = vadd.f32 %v843, %v861
        %s870 = sld [smem:[#allocation7 + $0x18]]
        %v871 = vstv %s870
        %v872 = vmul.f32 %v279, %v871
        %v873 = vmul.f32 %v280, %v871
        %v874 = vmul.f32 %v281, %v871
        %v875 = vmul.f32 %v282, %v871
        %880 = vrot.lane.b32.xlu0 %v872, 124
        %v881 = vpop.permute.xlu0 %880
        %882 = vrot.lane.b32.xlu0 %v873, 124
        %v883 = vpop.permute.xlu0 %882
        %884 = vrot.lane.b32.xlu0 %v874, 124
        %v885 = vpop.permute.xlu0 %884
        %886 = vrot.lane.b32.xlu0 %v875, 124
        %v887 = vpop.permute.xlu0 %886
        %v892 = vadd.f32 %v866, %v881
        %v893 = vadd.f32 %v867, %v883
        %v894 = vadd.f32 %v868, %v885
        %v895 = vadd.f32 %v869, %v887
        %vm900 = vcmask 1043456
        %v901 = vrot.slane %v892, 4
        %v902 = vrot.slane %v893, 4
        %v903 = vsel %vm900, %v901, %v902
        %v904 = vrot.slane %v894, 4
        %v905 = vrot.slane %v895, 4
        %v906 = vsel %vm900, %v904, %v905
        %v911 = vadd.f32 %v782, %v903
        %v912 = vadd.f32 %v783, %v902
        %v913 = vadd.f32 %v784, %v906
        %v914 = vadd.f32 %v785, %v905
        %s915 = sld [smem:[#allocation8]]
        %v916 = vstv %s915
        %v917 = vmul.f32 %v911, %v916
        %v918 = vmul.f32 %v912, %v916
        %v919 = vmul.f32 %v913, %v916
        %v920 = vmul.f32 %v914, %v916
        %s921 = sld [smem:[#allocation3]]
        %v922 = vstv %s921
        %v923 = vadd.f32 %v917, %v922
        %v924 = vadd.f32 %v918, %v922
        %v925 = vadd.f32 %v919, %v922
        %v926 = vadd.f32 %v920, %v922
        %s927 = sld [smem:[#allocation8 + $0x1]]
        %v928 = vstv %s927
        %v929 = vmul.f32 %v911, %v928
        %v930 = vmul.f32 %v912, %v928
        %v931 = vmul.f32 %v913, %v928
        %v932 = vmul.f32 %v914, %v928
        %937 = vrot.lane.b32.xlu0 %v929, 127
        %v938 = vpop.permute.xlu0 %937
        %939 = vrot.lane.b32.xlu0 %v930, 127
        %v940 = vpop.permute.xlu0 %939
        %941 = vrot.lane.b32.xlu0 %v931, 127
        %v942 = vpop.permute.xlu0 %941
        %943 = vrot.lane.b32.xlu0 %v932, 127
        %v944 = vpop.permute.xlu0 %943
        %v949 = vadd.f32 %v923, %v938
        %v950 = vadd.f32 %v924, %v940
        %v951 = vadd.f32 %v925, %v942
        %v952 = vadd.f32 %v926, %v944
        %s953 = sld [smem:[#allocation8 + $0x2]]
        %v954 = vstv %s953
        %v955 = vmul.f32 %v911, %v954
        %v956 = vmul.f32 %v912, %v954
        %v957 = vmul.f32 %v913, %v954
        %v958 = vmul.f32 %v914, %v954
        %963 = vrot.lane.b32.xlu0 %v955, 126
        %v964 = vpop.permute.xlu0 %963
        %965 = vrot.lane.b32.xlu0 %v956, 126
        %v966 = vpop.permute.xlu0 %965
        %967 = vrot.lane.b32.xlu0 %v957, 126
        %v968 = vpop.permute.xlu0 %967
        %969 = vrot.lane.b32.xlu0 %v958, 126
        %v970 = vpop.permute.xlu0 %969
        %v975 = vadd.f32 %v949, %v964
        %v976 = vadd.f32 %v950, %v966
        %v977 = vadd.f32 %v951, %v968
        %v978 = vadd.f32 %v952, %v970
        %s979 = sld [smem:[#allocation8 + $0x3]]
        %v980 = vstv %s979
        %v981 = vmul.f32 %v911, %v980
        %v982 = vmul.f32 %v912, %v980
        %v983 = vmul.f32 %v913, %v980
        %v984 = vmul.f32 %v914, %v980
        %s985 = sld [smem:[#allocation8 + $0x4]]
        %v986 = vstv %s985
        %v987 = vmul.f32 %v911, %v986
        %v988 = vmul.f32 %v912, %v986
        %v989 = vmul.f32 %v913, %v986
        %v990 = vmul.f32 %v914, %v986
        %995 = vrot.lane.b32.xlu0 %v987, 127
        %v996 = vpop.permute.xlu0 %995
        %997 = vrot.lane.b32.xlu0 %v988, 127
        %v998 = vpop.permute.xlu0 %997
        %999 = vrot.lane.b32.xlu0 %v989, 127
        %v1000 = vpop.permute.xlu0 %999
        %1001 = vrot.lane.b32.xlu0 %v990, 127
        %v1002 = vpop.permute.xlu0 %1001
        %v1007 = vadd.f32 %v981, %v996
        %v1008 = vadd.f32 %v982, %v998
        %v1009 = vadd.f32 %v983, %v1000
        %v1010 = vadd.f32 %v984, %v1002
        %s1011 = sld [smem:[#allocation8 + $0x5]]
        %v1012 = vstv %s1011
        %v1013 = vmul.f32 %v911, %v1012
        %v1014 = vmul.f32 %v912, %v1012
        %v1015 = vmul.f32 %v913, %v1012
        %v1016 = vmul.f32 %v914, %v1012
        %1021 = vrot.lane.b32.xlu0 %v1013, 126
        %v1022 = vpop.permute.xlu0 %1021
        %1023 = vrot.lane.b32.xlu0 %v1014, 126
        %v1024 = vpop.permute.xlu0 %1023
        %1025 = vrot.lane.b32.xlu0 %v1015, 126
        %v1026 = vpop.permute.xlu0 %1025
        %1027 = vrot.lane.b32.xlu0 %v1016, 126
        %v1028 = vpop.permute.xlu0 %1027
        %v1033 = vadd.f32 %v1007, %v1022
        %v1034 = vadd.f32 %v1008, %v1024
        %v1035 = vadd.f32 %v1009, %v1026
        %v1036 = vadd.f32 %v1010, %v1028
        %v1041 = vrot.slane %v1033, 1
        %v1042 = vrot.slane %v1034, 1
        %v1043 = vsel %vm513, %v1041, %v1042
        %v1044 = vrot.slane %v1035, 1
        %v1045 = vrot.slane %v1036, 1
        %v1046 = vsel %vm513, %v1044, %v1045
        %v1051 = vadd.f32 %v975, %v1043
        %v1052 = vadd.f32 %v976, %v1042
        %v1053 = vadd.f32 %v977, %v1046
        %v1054 = vadd.f32 %v978, %v1045
        %s1055 = sld [smem:[#allocation8 + $0x6]]
        %v1056 = vstv %s1055
        %v1057 = vmul.f32 %v911, %v1056
        %v1058 = vmul.f32 %v912, %v1056
        %v1059 = vmul.f32 %v913, %v1056
        %v1060 = vmul.f32 %v914, %v1056
        %s1061 = sld [smem:[#allocation8 + $0x7]]
        %v1062 = vstv %s1061
        %v1063 = vmul.f32 %v911, %v1062
        %v1064 = vmul.f32 %v912, %v1062
        %v1065 = vmul.f32 %v913, %v1062
        %v1066 = vmul.f32 %v914, %v1062
        %1071 = vrot.lane.b32.xlu0 %v1063, 127
        %v1072 = vpop.permute.xlu0 %1071
        %1073 = vrot.lane.b32.xlu0 %v1064, 127
        %v1074 = vpop.permute.xlu0 %1073
        %1075 = vrot.lane.b32.xlu0 %v1065, 127
        %v1076 = vpop.permute.xlu0 %1075
        %1077 = vrot.lane.b32.xlu0 %v1066, 127
        %v1078 = vpop.permute.xlu0 %1077
        %v1083 = vadd.f32 %v1057, %v1072
        %v1084 = vadd.f32 %v1058, %v1074
        %v1085 = vadd.f32 %v1059, %v1076
        %v1086 = vadd.f32 %v1060, %v1078
        %s1087 = sld [smem:[#allocation8 + $0x8]]
        %v1088 = vstv %s1087
        %v1089 = vmul.f32 %v911, %v1088
        %v1090 = vmul.f32 %v912, %v1088
        %v1091 = vmul.f32 %v913, %v1088
        %v1092 = vmul.f32 %v914, %v1088
        %1097 = vrot.lane.b32.xlu0 %v1089, 126
        %v1098 = vpop.permute.xlu0 %1097
        %1099 = vrot.lane.b32.xlu0 %v1090, 126
        %v1100 = vpop.permute.xlu0 %1099
        %1101 = vrot.lane.b32.xlu0 %v1091, 126
        %v1102 = vpop.permute.xlu0 %1101
        %1103 = vrot.lane.b32.xlu0 %v1092, 126
        %v1104 = vpop.permute.xlu0 %1103
        %v1109 = vadd.f32 %v1083, %v1098
        %v1110 = vadd.f32 %v1084, %v1100
        %v1111 = vadd.f32 %v1085, %v1102
        %v1112 = vadd.f32 %v1086, %v1104
        %v1117 = vrot.slane %v1109, 2
        %v1118 = vrot.slane %v1110, 2
        %v1119 = vsel %vm642, %v1117, %v1118
        %v1120 = vrot.slane %v1111, 2
        %v1121 = vrot.slane %v1112, 2
        %v1122 = vsel %vm642, %v1120, %v1121
        %v1127 = vadd.f32 %v1051, %v1119
        %v1128 = vadd.f32 %v1052, %v1118
        %v1129 = vadd.f32 %v1053, %v1122
        %v1130 = vadd.f32 %v1054, %v1121
        %vm1131 = vcmask 80896
        %1132 = vst.msk [vmem:[%s277] sm:$0xff] %vm1131, %v1127
        %vm1133 = vcmask 74752
        %1134 = vst.msk [vmem:[%s277 + $0x8] sm:$0x3] %vm1133, %v1128
        %1135 = vst.msk [vmem:[%s277 + $0x10] sm:$0xff] %vm1131, %v1129
        %1136 = vst.msk [vmem:[%s277 + $0x18] sm:$0x3] %vm1133, %v1130
        %s1137 = smul.u32 2, %s23
        %p1138 = scmp.lt.s32.totalorder %s1137, 3
        %s1139 = scalar_select %p1138, %s1137, 3
        %s1140 = smul.addr %s1139, 2
        %s1141 = smul.addr %s1140, 8
        %s1142 = scalar_lea.vmem %s5, %s1141
        // Predicated region
        $region53: #{tpu_custom_call.1} parent=39 // pred_check
          %p1143 = pneg %p151
        $region54: #{tpu_custom_call.1} parent=39 // pred_check_branch
          %1145 = sbr.rel (%p1143) target = $region56
        $region55: #{tpu_custom_call.1} parent=39 // pred_region
          %s1146 = smul.u32 2, %s23
        $region56: #{tpu_custom_call.1} parent=39 // pred_fallthru
          _
      $region40: #{tpu_custom_call.1} parent=5 // pred_fallthru
        _
      %p1147 = scmp.le.s32.totalorder 2, %s18
      // Predicated region
      $region57: #{tpu_custom_call.1} parent=5 // pred_check
        %p1148 = pneg %p1147
      $region58: #{tpu_custom_call.1} parent=5 // pred_check_branch
        %1150 = sbr.rel (%p1148) target = $region60
      $region59: #{tpu_custom_call.1} parent=5 // pred_region
        %s1151 = ssub.s32 %s18, 2
        // Predicated region
        $region61: #{tpu_custom_call.1} parent=59 // pred_check
          %p1152 = pneg %p157
        $region62: #{tpu_custom_call.1} parent=59 // pred_check_branch
          %1154 = sbr.rel (%p1152) target = $region64
        $region63: #{tpu_custom_call.1} parent=59 // pred_region
          %s1155 = smul.u32 2, %s24
          %p1156 = scmp.lt.s32.totalorder %s1155, 3
          %s1157 = scalar_select %p1156, %s1155, 3
          %s1158 = smul.addr %s1157, 2
          %s1159 = smul.addr %s1158, 8
          %s1160 = scalar_lea.vmem %s5, %s1159
        $region64: #{tpu_custom_call.1} parent=59 // pred_fallthru
          _
      $region60: #{tpu_custom_call.1} parent=5 // pred_fallthru
        _
    $region6: #{tpu_custom_call.1} parent=1 // loop_footer
      %s22 = sadd.s32 1, %s18
    $region7: #{tpu_custom_call.1} parent=1 // loop_footer_branch
      %17 = sbr.rel target = $region3
    $region8: #{tpu_custom_call.1} parent=1 // loop_exit
      _
    %1161 = vsyncpa [#allocation5], 1
    %s1162 = scalar_lea.sflag [#allocation5], 1
    %1163 = vsyncpa %s1162, 1
    %1164 = vsyncpa [#allocation6], 1
    %s1165 = scalar_lea.sflag [#allocation6], 1
    %1166 = vsyncpa %s1165, 1
    %1167 = vsyncpa [#allocation9], 1

</llo_original>
